<compile_context>
chip_gen: v6e
topology: v6e:2x2x1
jax: 0.10.0
libtpu: 0.0.40
codegen_flags: <defaults>
</compile_context>

<pallas_src>
import functools

import jax
import jax.numpy as jnp
from jax.experimental import pallas as pl
from jax.experimental.pallas import tpu as pltpu


def casii_head_kernel(q_ref, k_ref, w_ref, p_ref, logit_ref, attn_ref, *, H, M):
    q_in = q_ref[...]            # (N, D)   shared query bag
    k_in = k_ref[0]              # (M, D)   this head's key bag
    w = w_ref[0]                 # (D, 3H)  [WQ | WV | WK] stacked along lanes
    p = p_ref[0]                 # (8, P)   packed small parameters

    bq = p[0:1, :H]              # (1, H)
    bv = p[1:2, :H]              # (1, H)
    bk = p[2:3, :H]              # (1, H)
    wa = p[3:4, :M]              # (1, M)
    wc = p[4:5, :H]              # (1, H)
    ba = p[5:6, 0:1]             # (1, 1)
    bc = p[5:6, 1:2]             # (1, 1)
    inv_tau = p[5:6, 2:3]        # (1, 1)

    # WQ (Linear+Tanh) and WV (Linear+ReLU) share one stacked matmul on the
    # shared query bag; WK (Linear+Tanh) runs on the key bag.
    qv = jnp.dot(q_in, w[:, :2 * H], preferred_element_type=jnp.float32)     # (N, 2H)
    qh = jnp.tanh(qv[:, :H] + bq)                                            # (N, H)
    value = jnp.maximum(qv[:, H:2 * H] + bv, 0.0)                            # (N, H)
    kh = jnp.tanh(jnp.dot(k_in, w[:, 2 * H:3 * H],
                          preferred_element_type=jnp.float32) + bk)          # (M, H)

    # F.normalize(p=2, dim=-1, eps=1e-12): x / max(||x||, 1e-12)
    #   == x * rsqrt(max(sum(x^2), 1e-24))   (rsqrt lowers to the EUP)
    qn = qh * jax.lax.rsqrt(jnp.maximum(jnp.sum(qh * qh, axis=-1, keepdims=True), 1e-24))
    kn = kh * jax.lax.rsqrt(jnp.maximum(jnp.sum(kh * kh, axis=-1, keepdims=True), 1e-24))

    # A = q_norm @ k_norm^T  (contract on hidden dim, no explicit transpose)
    A = jax.lax.dot_general(qn, kn, (((1,), (1,)), ((), ())),
                            preferred_element_type=jnp.float32)              # (N, M)

    # metafusion: scores = (A @ wa^T + ba) / tau, computed lane-dense as a
    # (1, N) row so the softmax over query positions reduces along lanes.
    # TODO(synk): topk / bottomk (topq, botq) are computed but discarded by the
    # reference forward pass, so they are not emitted here.
    scores = (jax.lax.dot_general(wa, A, (((1,), (1,)), ((), ())),
                                  preferred_element_type=jnp.float32) + ba) * inv_tau
    m = jnp.max(scores, axis=-1, keepdims=True)
    e = jnp.exp(scores - m)
    attn = e * pl.reciprocal(jnp.sum(e, axis=-1, keepdims=True), approx=True)  # (1, N)

    # Attention-weighted pooling z = attn @ value, then classifier Linear(H, 1).
    z = jnp.dot(attn, value, preferred_element_type=jnp.float32)               # (1, H)
    logit_ref[0] = jnp.sum(z * wc, axis=-1, keepdims=True) + bc                # (1, 1)
    attn_ref[0] = attn                                                         # (1, N)


def _pack_params(params, tau):
    """Pack per-head params into one weight block and one small-param block."""
    n_head, D, H = params["wq"].shape
    M = params["wa"].shape[-1]
    P = max(H, M, 8)

    # (n_head, D, 3H) = [WQ | WV | WK] stacked along the output (lane) dim.
    w_proj = jnp.concatenate([params["wq"], params["wv"], params["wk"]], axis=-1)

    def row(x):
        x = x.reshape(n_head, -1).astype(jnp.float32)
        return jnp.pad(x, ((0, 0), (0, P - x.shape[-1])))

    scal = jnp.concatenate(
        [params["ba"].reshape(n_head, 1), params["bc"].reshape(n_head, 1),
         jnp.full((n_head, 1), 1.0 / tau, jnp.float32)], axis=-1)
    p_pack = jnp.stack(
        [row(params["bq"]), row(params["bv"]), row(params["bk"]),
         row(params["wa"]), row(params["wc"]), row(scal),
         jnp.zeros((n_head, P), jnp.float32), jnp.zeros((n_head, P), jnp.float32)],
        axis=1)                                                    # (n_head, 8, P)
    return w_proj, p_pack, H, M, P


def casii_mb_forward(query, keys, params, tau=1.0):
    """query: (N, D) f32.  keys: (n_head, M, D) f32.  Returns (Y_hat, logits, As)."""
    n_head, M, D = keys.shape
    N = query.shape[0]
    w_proj, p_pack, H, _, P = _pack_params(params, tau)

    def head_spec(shape):
        return pl.BlockSpec((1,) + shape, lambda h: (h, 0, 0))

    kernel = functools.partial(casii_head_kernel, H=H, M=M)

    logits, attn = pl.pallas_call(
        kernel,
        out_shape=(
            jax.ShapeDtypeStruct((n_head, 1, 1), jnp.float32),
            jax.ShapeDtypeStruct((n_head, 1, N), jnp.float32),
        ),
        grid_spec=pltpu.PrefetchScalarGridSpec(
            num_scalar_prefetch=0,
            grid=(n_head,),
            in_specs=[
                pl.BlockSpec((N, D), lambda h: (0, 0)),   # shared query bag
                head_spec((M, D)),                        # per-head key bag
                head_spec((D, 3 * H)),                    # [WQ | WV | WK]
                head_spec((8, P)),                        # packed small params
            ],
            out_specs=[head_spec((1, 1)), head_spec((1, N))],
        ),
        compiler_params=pltpu.CompilerParams(dimension_semantics=("parallel",)),
    )(query, keys, w_proj, p_pack)

    logits = logits.reshape(1, n_head)
    As = [attn[c].reshape(1, 1, N) for c in range(n_head)]          # (B=1, 1, N) per head
    Y_hat = jnp.argmax(logits, axis=1).reshape(1, 1)                # torch.topk(..., 1)[1]
    return Y_hat, logits, As


def ref_forward(query, keys, params, tau=1.0):
    """Pure-JAX reference of CASii_MB.forward (B=1)."""
    n_head = keys.shape[0]
    logits, As = [], []
    for c in range(n_head):
        wq, bq = params["wq"][c], params["bq"][c]
        wk, bk = params["wk"][c], params["bk"][c]
        wv, bv = params["wv"][c], params["bv"][c]
        wa, ba = params["wa"][c], params["ba"][c]
        wc, bc = params["wc"][c], params["bc"][c]
        value = jnp.maximum(query @ wv + bv, 0.0)
        qh = jnp.tanh(query @ wq + bq)
        kh = jnp.tanh(keys[c] @ wk + bk)
        qn = qh / jnp.maximum(jnp.linalg.norm(qh, axis=-1, keepdims=True), 1e-12)
        kn = kh / jnp.maximum(jnp.linalg.norm(kh, axis=-1, keepdims=True), 1e-12)
        A = qn @ kn.T
        s = (A @ wa.T + ba) / tau
        attn = jax.nn.softmax(s, axis=0)
        z = (attn * value).sum(axis=0, keepdims=True)
        logits.append((z * wc).sum() + bc[0, 0])
        As.append(attn.reshape(1, 1, -1))
    logits = jnp.stack(logits).reshape(1, n_head)
    return jnp.argmax(logits, axis=1).reshape(1, 1), logits, As


def init_params(key, n_head, D, H, M):
    """PyTorch-style Linear init (uniform +/- 1/sqrt(fan_in)), per head, stacked."""
    ks = jax.random.split(key, 12)
    u = lambda k, shape, fan: jax.random.uniform(
        k, shape, jnp.float32, -1.0 / jnp.sqrt(fan), 1.0 / jnp.sqrt(fan))
    return {
        "wq": u(ks[0], (n_head, D, H), D), "bq": u(ks[1], (n_head, 1, H), D),
        "wk": u(ks[2], (n_head, D, H), D), "bk": u(ks[3], (n_head, 1, H), D),
        "wv": u(ks[4], (n_head, D, H), D), "bv": u(ks[5], (n_head, 1, H), D),
        "wa": u(ks[6], (n_head, 1, M), M), "ba": u(ks[7], (n_head, 1, 1), M),
        "wc": u(ks[8], (n_head, 1, H), H), "bc": u(ks[9], (n_head, 1, 1), H),
    }


if __name__ == "__main__":
    # Small shapes consistent with the module: B=1 (required by the torch code),
    # inputd=32, hd=32, n_head=2, query bag N=16 instances, A_dims=[16, 16].
    N, M, D, H, n_head = 16, 16, 32, 32, 2
    tau = 1.0

    root = jax.random.PRNGKey(0)
    k_q, k_k, k_p = jax.random.split(root, 3)
    query = jax.random.normal(k_q, (N, D), jnp.float32)            # x[0] (B=1 squeezed)
    keys = jax.random.normal(k_k, (n_head, M, D), jnp.float32)     # x[1], x[2]
    params = init_params(k_p, n_head, D, H, M)

    Y_hat, logits, As = casii_mb_forward(query, keys, params, tau)
    jax.block_until_ready((Y_hat, logits, As))

    # Tolerance is 1e-3 (not 1e-5) because the kernel uses the EUP approximate
    # reciprocal for the softmax denominator.
    Y_hat_ref, logits_ref, As_ref = ref_forward(query, keys, params, tau)
    assert jnp.allclose(logits, logits_ref, atol=1e-3, rtol=1e-3), (logits, logits_ref)
    assert int(Y_hat[0, 0]) == int(Y_hat_ref[0, 0])
    for a, ar in zip(As, As_ref):
        assert a.shape == (1, 1, N)
        assert jnp.allclose(a, ar, atol=1e-3, rtol=1e-3)

    print("KERNEL_OK")
</pallas_src>

<mosaic_0001>
module attributes {stable_mosaic.version = 11 : i64} {
  func.func @casii_head_kernel(%arg0: i32, %arg1: memref<16x32xf32, #tpu.memory_space<vmem>>, %arg2: memref<1x16x32xf32, #tpu.memory_space<vmem>>, %arg3: memref<1x32x96xf32, #tpu.memory_space<vmem>>, %arg4: memref<1x8x32xf32, #tpu.memory_space<vmem>>, %arg5: memref<1x1x1xf32, #tpu.memory_space<vmem>>, %arg6: memref<1x1x16xf32, #tpu.memory_space<vmem>>) attributes {dimension_semantics = [#tpu.dimension_semantics<parallel>], iteration_bounds = array<i64: 2>, scalar_prefetch = 0 : i64, scratch_operands = 0 : i64, tpu.core_type = #tpu.core_type<tc>, window_params = [{pipeline_mode = #tpu.pipeline_mode<synchronous>, transform_indices = @transform_0, window_bounds = array<i64: 16, 32>}, {transform_indices = @transform_1, window_bounds = array<i64: 1, 16, 32>}, {transform_indices = @transform_2, window_bounds = array<i64: 1, 32, 96>}, {transform_indices = @transform_3, window_bounds = array<i64: 1, 8, 32>}, {transform_indices = @transform_4, window_bounds = array<i64: 1, 1, 1>}, {transform_indices = @transform_5, window_bounds = array<i64: 1, 1, 16>}]} {
    %c0 = arith.constant 0 : index
    %c0_0 = arith.constant 0 : index
    %0 = vector.load %arg1[%c0, %c0_0] : memref<16x32xf32, #tpu.memory_space<vmem>>, vector<16x32xf32>
    %c0_1 = arith.constant 0 : index
    %c0_2 = arith.constant 0 : index
    %c0_3 = arith.constant 0 : index
    %1 = vector.load %arg2[%c0_1, %c0_2, %c0_3] : memref<1x16x32xf32, #tpu.memory_space<vmem>>, vector<1x16x32xf32>
    %2 = vector.shape_cast %1 : vector<1x16x32xf32> to vector<16x32xf32>
    %c0_4 = arith.constant 0 : index
    %c0_5 = arith.constant 0 : index
    %c0_6 = arith.constant 0 : index
    %3 = vector.load %arg3[%c0_4, %c0_5, %c0_6] : memref<1x32x96xf32, #tpu.memory_space<vmem>>, vector<1x32x96xf32>
    %4 = vector.shape_cast %3 : vector<1x32x96xf32> to vector<32x96xf32>
    %c0_7 = arith.constant 0 : index
    %c0_8 = arith.constant 0 : index
    %c0_9 = arith.constant 0 : index
    %5 = vector.load %arg4[%c0_7, %c0_8, %c0_9] : memref<1x8x32xf32, #tpu.memory_space<vmem>>, vector<1x8x32xf32>
    %6 = vector.shape_cast %5 : vector<1x8x32xf32> to vector<8x32xf32>
    %7 = vector.extract_strided_slice %6 {offsets = [0, 0], sizes = [1, 32], strides = [1, 1]} : vector<8x32xf32> to vector<1x32xf32>
    %8 = vector.extract_strided_slice %6 {offsets = [1, 0], sizes = [1, 32], strides = [1, 1]} : vector<8x32xf32> to vector<1x32xf32>
    %9 = vector.extract_strided_slice %6 {offsets = [2, 0], sizes = [1, 32], strides = [1, 1]} : vector<8x32xf32> to vector<1x32xf32>
    %10 = vector.extract_strided_slice %6 {offsets = [3, 0], sizes = [1, 16], strides = [1, 1]} : vector<8x32xf32> to vector<1x16xf32>
    %11 = vector.extract_strided_slice %6 {offsets = [4, 0], sizes = [1, 32], strides = [1, 1]} : vector<8x32xf32> to vector<1x32xf32>
    %12 = vector.extract_strided_slice %6 {offsets = [5, 0], sizes = [1, 1], strides = [1, 1]} : vector<8x32xf32> to vector<1x1xf32>
    %13 = vector.extract_strided_slice %6 {offsets = [5, 1], sizes = [1, 1], strides = [1, 1]} : vector<8x32xf32> to vector<1x1xf32>
    %14 = vector.extract_strided_slice %6 {offsets = [5, 2], sizes = [1, 1], strides = [1, 1]} : vector<8x32xf32> to vector<1x1xf32>
    %15 = vector.extract_strided_slice %4 {offsets = [0, 0], sizes = [32, 64], strides = [1, 1]} : vector<32x96xf32> to vector<32x64xf32>
    %cst = arith.constant dense<0.000000e+00> : vector<16x64xf32>
    %16 = tpu.matmul %0, %15, %cst {dimension_numbers = #tpu.dot_dimension_numbers<[1], [0], [0], [1], [0, 0, 1, 1], [], []>} : vector<16x32xf32>, vector<32x64xf32>, vector<16x64xf32> -> vector<16x64xf32>
    %17 = vector.extract_strided_slice %16 {offsets = [0, 0], sizes = [16, 32], strides = [1, 1]} : vector<16x64xf32> to vector<16x32xf32>
    %18 = vector.broadcast %7 : vector<1x32xf32> to vector<16x32xf32>
    %19 = arith.addf %17, %18 : vector<16x32xf32>
    %20 = math.tanh %19 : vector<16x32xf32>
    %21 = vector.extract_strided_slice %16 {offsets = [0, 32], sizes = [16, 32], strides = [1, 1]} : vector<16x64xf32> to vector<16x32xf32>
    %22 = vector.broadcast %8 : vector<1x32xf32> to vector<16x32xf32>
    %23 = arith.addf %21, %22 : vector<16x32xf32>
    %cst_10 = arith.constant 0.000000e+00 : f32
    %24 = vector.broadcast %cst_10 : f32 to vector<16x32xf32>
    %25 = arith.maximumf %23, %24 : vector<16x32xf32>
    %26 = vector.extract_strided_slice %4 {offsets = [0, 64], sizes = [32, 32], strides = [1, 1]} : vector<32x96xf32> to vector<32x32xf32>
    %cst_11 = arith.constant dense<0.000000e+00> : vector<16x32xf32>
    %27 = tpu.matmul %2, %26, %cst_11 {dimension_numbers = #tpu.dot_dimension_numbers<[1], [0], [0], [1], [0, 0, 1, 1], [], []>} : vector<16x32xf32>, vector<32x32xf32>, vector<16x32xf32> -> vector<16x32xf32>
    %28 = vector.broadcast %9 : vector<1x32xf32> to vector<16x32xf32>
    %29 = arith.addf %27, %28 : vector<16x32xf32>
    %30 = math.tanh %29 : vector<16x32xf32>
    %31 = arith.mulf %20, %20 : vector<16x32xf32>
    %cst_12 = arith.constant dense<0.000000e+00> : vector<16xf32>
    %32 = vector.multi_reduction <add>, %31, %cst_12 [1] : vector<16x32xf32> to vector<16xf32>
    %33 = vector.shape_cast %32 : vector<16xf32> to vector<16x1xf32>
    %cst_13 = arith.constant 1.000000e-24 : f32
    %34 = vector.broadcast %cst_13 : f32 to vector<16x1xf32>
    %35 = arith.maximumf %33, %34 : vector<16x1xf32>
    %36 = math.rsqrt %35 : vector<16x1xf32>
    %37 = vector.broadcast %36 : vector<16x1xf32> to vector<16x32xf32>
    %38 = arith.mulf %20, %37 : vector<16x32xf32>
    %39 = arith.mulf %30, %30 : vector<16x32xf32>
    %cst_14 = arith.constant dense<0.000000e+00> : vector<16xf32>
    %40 = vector.multi_reduction <add>, %39, %cst_14 [1] : vector<16x32xf32> to vector<16xf32>
    %41 = vector.shape_cast %40 : vector<16xf32> to vector<16x1xf32>
    %cst_15 = arith.constant 1.000000e-24 : f32
    %42 = vector.broadcast %cst_15 : f32 to vector<16x1xf32>
    %43 = arith.maximumf %41, %42 : vector<16x1xf32>
    %44 = math.rsqrt %43 : vector<16x1xf32>
    %45 = vector.broadcast %44 : vector<16x1xf32> to vector<16x32xf32>
    %46 = arith.mulf %30, %45 : vector<16x32xf32>
    %cst_16 = arith.constant dense<0.000000e+00> : vector<16x16xf32>
    %47 = tpu.matmul %38, %46, %cst_16 {dimension_numbers = #tpu.dot_dimension_numbers<[1], [1], [0], [0], [0, 0, 1, 0], [], []>} : vector<16x32xf32>, vector<16x32xf32>, vector<16x16xf32> -> vector<16x16xf32>
    %cst_17 = arith.constant dense<0.000000e+00> : vector<1x16xf32>
    %48 = tpu.matmul %10, %47, %cst_17 {dimension_numbers = #tpu.dot_dimension_numbers<[1], [1], [0], [0], [0, 0, 1, 0], [], []>} : vector<1x16xf32>, vector<16x16xf32>, vector<1x16xf32> -> vector<1x16xf32>
    %49 = vector.broadcast %12 : vector<1x1xf32> to vector<1x16xf32>
    %50 = arith.addf %48, %49 : vector<1x16xf32>
    %51 = vector.broadcast %14 : vector<1x1xf32> to vector<1x16xf32>
    %52 = arith.mulf %50, %51 : vector<1x16xf32>
    %cst_18 = arith.constant dense<0xFF800000> : vector<1xf32>
    %53 = vector.multi_reduction <maximumf>, %52, %cst_18 [1] : vector<1x16xf32> to vector<1xf32>
    %54 = vector.shape_cast %53 : vector<1xf32> to vector<1x1xf32>
    %55 = vector.broadcast %54 : vector<1x1xf32> to vector<1x16xf32>
    %56 = arith.subf %52, %55 : vector<1x16xf32>
    %57 = math.exp %56 : vector<1x16xf32>
    %cst_19 = arith.constant dense<0.000000e+00> : vector<1xf32>
    %58 = vector.multi_reduction <add>, %57, %cst_19 [1] : vector<1x16xf32> to vector<1xf32>
    %59 = vector.shape_cast %58 : vector<1xf32> to vector<1x1xf32>
    %60 = tpu.reciprocal %59 {approx = true} : vector<1x1xf32> -> vector<1x1xf32>
    %61 = vector.broadcast %60 : vector<1x1xf32> to vector<1x16xf32>
    %62 = arith.mulf %57, %61 : vector<1x16xf32>
    %cst_20 = arith.constant dense<0.000000e+00> : vector<1x32xf32>
    %63 = tpu.matmul %62, %25, %cst_20 {dimension_numbers = #tpu.dot_dimension_numbers<[1], [0], [0], [1], [0, 0, 1, 1], [], []>} : vector<1x16xf32>, vector<16x32xf32>, vector<1x32xf32> -> vector<1x32xf32>
    %64 = arith.mulf %63, %11 : vector<1x32xf32>
    %cst_21 = arith.constant dense<0.000000e+00> : vector<1xf32>
    %65 = vector.multi_reduction <add>, %64, %cst_21 [1] : vector<1x32xf32> to vector<1xf32>
    %66 = vector.shape_cast %65 : vector<1xf32> to vector<1x1xf32>
    %67 = arith.addf %66, %13 : vector<1x1xf32>
    %c0_22 = arith.constant 0 : index
    %c0_23 = arith.constant 0 : index
    %c0_24 = arith.constant 0 : index
    %68 = vector.load %arg5[%c0_22, %c0_23, %c0_24] : memref<1x1x1xf32, #tpu.memory_space<vmem>>, vector<1x1x1xf32>
    %69 = vector.shape_cast %68 : vector<1x1x1xf32> to vector<1x1xf32>
    %70 = vector.shape_cast %67 : vector<1x1xf32> to vector<1x1x1xf32>
    tpu.vector_store %arg5[%c0_22, %c0_23, %c0_24], %70 {strides = array<i32>} : memref<1x1x1xf32, #tpu.memory_space<vmem>>, vector<1x1x1xf32>,
    %c0_25 = arith.constant 0 : index
    %c0_26 = arith.constant 0 : index
    %c0_27 = arith.constant 0 : index
    %71 = vector.load %arg6[%c0_25, %c0_26, %c0_27] : memref<1x1x16xf32, #tpu.memory_space<vmem>>, vector<1x1x16xf32>
    %72 = vector.shape_cast %71 : vector<1x1x16xf32> to vector<1x16xf32>
    %73 = vector.shape_cast %62 : vector<1x16xf32> to vector<1x1x16xf32>
    tpu.vector_store %arg6[%c0_25, %c0_26, %c0_27], %73 {strides = array<i32>} : memref<1x1x16xf32, #tpu.memory_space<vmem>>, vector<1x1x16xf32>,
    return
  }
  func.func @transform_0(%arg0: i32) -> (i32, i32) {
    %c0_i32 = arith.constant 0 : i32
    %c0_i32_0 = arith.constant 0 : i32
    %c0_i32_1 = arith.constant 0 : i32
    return %c0_i32, %c0_i32_0 : i32, i32
  }
  func.func @transform_1(%arg0: i32) -> (i32, i32, i32) {
    %c0_i32 = arith.constant 0 : i32
    %c0_i32_0 = arith.constant 0 : i32
    %c0_i32_1 = arith.constant 0 : i32
    return %arg0, %c0_i32, %c0_i32_0 : i32, i32, i32
  }
  func.func @transform_2(%arg0: i32) -> (i32, i32, i32) {
    %c0_i32 = arith.constant 0 : i32
    %c0_i32_0 = arith.constant 0 : i32
    %c0_i32_1 = arith.constant 0 : i32
    return %arg0, %c0_i32, %c0_i32_0 : i32, i32, i32
  }
  func.func @transform_3(%arg0: i32) -> (i32, i32, i32) {
    %c0_i32 = arith.constant 0 : i32
    %c0_i32_0 = arith.constant 0 : i32
    %c0_i32_1 = arith.constant 0 : i32
    return %arg0, %c0_i32, %c0_i32_0 : i32, i32, i32
  }
  func.func @transform_4(%arg0: i32) -> (i32, i32, i32) {
    %c0_i32 = arith.constant 0 : i32
    %c0_i32_0 = arith.constant 0 : i32
    %c0_i32_1 = arith.constant 0 : i32
    return %arg0, %c0_i32, %c0_i32_0 : i32, i32, i32
  }
  func.func @transform_5(%arg0: i32) -> (i32, i32, i32) {
    %c0_i32 = arith.constant 0 : i32
    %c0_i32_0 = arith.constant 0 : i32
    %c0_i32_1 = arith.constant 0 : i32
    return %arg0, %c0_i32, %c0_i32_0 : i32, i32, i32
  }
}

</mosaic_0001>

<llo_original>
// kernel: tpu_custom_call.1
$region0: #{tpu_custom_call.1}
  #allocation0 [shape = 'u32[]', space=smem, size = 0x4, offset = 0x4, fixed_abs, tag = 'smem constant byte address 0x4 - core index']
  #allocation1 [shape = 'u32[144,128]{1,0:T(1,128)}', space=vmem, size = 0x12000, scoped, tag = 'internal scratch']
  %s0 = inlined_call_operand.hbm [shape: f32[16,32], index: 0, kind: input, shape index: {}]
  %s1 = inlined_call_operand.hbm [shape: f32[2,16,32], index: 1, kind: input, shape index: {}]
  %s2 = inlined_call_operand.hbm [shape: f32[2,32,96], index: 2, kind: input, shape index: {}]
  %s3 = inlined_call_operand.hbm [shape: f32[2,8,32], index: 3, kind: input, shape index: {}]
  %s4 = inlined_call_operand.vmem [shape: f32[2,1,1], index: 4, kind: output, shape index: {0}]
  %s5 = inlined_call_operand.hbm [shape: f32[2,1,16], index: 5, kind: output, shape index: {1}]
  %6 = xla_tuple %s4, %s5
  %s7 = sld [smem:[#allocation0]]
  $region73: #{tpu_custom_call.1} parent=0
    _
  %s9 = ssub.s32 1, %s7
  %s10 = scalar_select 0, %s9, %s7
  $region1: #{tpu_custom_call.1} parent=0
    #allocation2 [shape = 'u8[8192]{0}', space=vmem, size = 0x2000, scoped, tag = 'input window, operand 0, single buffered']
    #allocation3 [shape = 's32[2]{0}', space=sflag, size = 0x8, scoped, tag = 'scoped memory for tpu_custom_call.1']
    #allocation4 [shape = 's32[2]{0}', space=sflag, size = 0x8, scoped, tag = 'scoped memory for tpu_custom_call.1']
    #allocation5 [shape = 'u8[16384]{0}', space=vmem, size = 0x4000, scoped, tag = 'input window, operand 1']
    #allocation6 [shape = 's32[2]{0}', space=sflag, size = 0x8, scoped, tag = 'scoped memory for tpu_custom_call.1']
    #allocation7 [shape = 'u8[32768]{0}', space=vmem, size = 0x8000, scoped, tag = 'input window, operand 2']
    #allocation8 [shape = 'u8[8192]{0}', space=vmem, size = 0x2000, scoped, tag = 'input window, operand 3']
    #allocation9 [shape = 's32[2]{0}', space=sflag, size = 0x8, scoped, tag = 'scoped memory for tpu_custom_call.1']
    #allocation10 [shape = 'u8[1024]{0}', space=vmem, size = 0x400, scoped, tag = 'output window, operand 1']
    %11 = vsyncpa [#allocation3], 0
    %12 = vsyncpa [#allocation6], 0
    %s13 = scalar_lea.sflag [#allocation6], 1
    %14 = vsyncpa %s13, 0
    %15 = vsyncpa [#allocation9], 0
    %s16 = scalar_lea.sflag [#allocation9], 1
    %17 = vsyncpa %s16, 0
    %18 = vsyncpa [#allocation4], 0
    %s19 = scalar_lea.sflag [#allocation4], 1
    %20 = vsyncpa %s19, 0
    loop: start=0, step=1, limit=4
    $region2: #{tpu_custom_call.1} parent=1 // loop_pre_header
      _
    $region3: #{tpu_custom_call.1} parent=1 // loop_header
      %s22 = sphi 0, %s26
      %p23 = scmp.ge.s32.totalorder %s22, 4
      %s30 = sphi 0, %s30
      %s32 = sphi 0, %s30
      %s33 = sphi 0, %s32
      %s47 = sphi 0, %s33
      %s53 = sphi 0, %s55
      %s56 = sphi 0, %s53
      %s57 = sphi 0, %s56
      %s73 = sphi 0, %s57
      %s79 = sphi 0, %s81
      %s82 = sphi 0, %s79
      %s83 = sphi 0, %s82
      %s99 = sphi 0, %s83
      %s105 = sphi 0, %s107
      %s108 = sphi 0, %s105
      %s109 = sphi 0, %s108
      %s125 = sphi 0, %s109
      %s131 = sphi 0, %s133
      %s134 = sphi 0, %s131
      %s135 = sphi 0, %s134
      %s151 = sphi 0, %s135
      %s157 = sphi 0, %s159
      %s160 = sphi 0, %s157
      %s161 = sphi 0, %s160
      %s177 = sphi 0, %s161
    $region4: #{tpu_custom_call.1} parent=1 // loop_header_branch
      %25 = sbr.rel (%p23) target = $region8
    $region5: #{tpu_custom_call.1} parent=1 // loop_body
      %s27 = ssub.s32 %s22, 1
      %s28 = ssub.s32 %s22, 2
      %s29 = sadd.s32 %s22, 1
      %s31 = sadd.s32 %s30, 1
      %p34 = scmp.eq.s32.totalorder %s22, 1
      %p35 = scmp.ne.s32.totalorder %s30, %s32
      %p36 = scmp.eq.s32.totalorder %s22, 0
      %p37 = por %p35, %p36
      %p38 = scmp.ne.s32.totalorder %s30, %s32
      %p39 = scmp.eq.s32.totalorder %s27, 1
      %p40 = por %p38, %p39
      %p41 = scmp.ne.s32.totalorder %s32, %s33
      %p42 = scmp.eq.s32.totalorder %s27, 0
      %p43 = por %p41, %p42
      %p44 = scmp.ne.s32.totalorder %s32, %s33
      %p45 = scmp.eq.s32.totalorder %s28, 1
      %p46 = por %p44, %p45
      %p48 = scmp.ne.s32.totalorder %s33, %s47
      %p49 = scmp.eq.s32.totalorder %s28, 0
      %p50 = por %p48, %p49
      %s51 = ssub.s32 %s22, %s29
      %p52 = scmp.eq.s32.totalorder %s51, 0
      %s54 = sadd.s32 %s53, 1
      %s55 = scalar_select %p52, %s53, %s54
      %p58 = pneg %p52
      %p59 = scmp.eq.s32.totalorder %s22, 1
      %p60 = por %p58, %p59
      %p61 = scmp.ne.s32.totalorder %s53, %s56
      %p62 = scmp.eq.s32.totalorder %s22, 0
      %p63 = por %p61, %p62
      %p64 = scmp.ne.s32.totalorder %s53, %s56
      %p65 = scmp.eq.s32.totalorder %s27, 1
      %p66 = por %p64, %p65
      %p67 = scmp.ne.s32.totalorder %s56, %s57
      %p68 = scmp.eq.s32.totalorder %s27, 0
      %p69 = por %p67, %p68
      %p70 = scmp.ne.s32.totalorder %s56, %s57
      %p71 = scmp.eq.s32.totalorder %s28, 1
      %p72 = por %p70, %p71
      %p74 = scmp.ne.s32.totalorder %s57, %s73
      %p75 = scmp.eq.s32.totalorder %s28, 0
      %p76 = por %p74, %p75
      %s77 = ssub.s32 %s22, %s29
      %p78 = scmp.eq.s32.totalorder %s77, 0
      %s80 = sadd.s32 %s79, 1
      %s81 = scalar_select %p78, %s79, %s80
      %p84 = pneg %p78
      %p85 = scmp.eq.s32.totalorder %s22, 1
      %p86 = por %p84, %p85
      %p87 = scmp.ne.s32.totalorder %s79, %s82
      %p88 = scmp.eq.s32.totalorder %s22, 0
      %p89 = por %p87, %p88
      %p90 = scmp.ne.s32.totalorder %s79, %s82
      %p91 = scmp.eq.s32.totalorder %s27, 1
      %p92 = por %p90, %p91
      %p93 = scmp.ne.s32.totalorder %s82, %s83
      %p94 = scmp.eq.s32.totalorder %s27, 0
      %p95 = por %p93, %p94
      %p96 = scmp.ne.s32.totalorder %s82, %s83
      %p97 = scmp.eq.s32.totalorder %s28, 1
      %p98 = por %p96, %p97
      %p100 = scmp.ne.s32.totalorder %s83, %s99
      %p101 = scmp.eq.s32.totalorder %s28, 0
      %p102 = por %p100, %p101
      %s103 = ssub.s32 %s22, %s29
      %p104 = scmp.eq.s32.totalorder %s103, 0
      %s106 = sadd.s32 %s105, 1
      %s107 = scalar_select %p104, %s105, %s106
      %p110 = pneg %p104
      %p111 = scmp.eq.s32.totalorder %s22, 1
      %p112 = por %p110, %p111
      %p113 = scmp.ne.s32.totalorder %s105, %s108
      %p114 = scmp.eq.s32.totalorder %s22, 0
      %p115 = por %p113, %p114
      %p116 = scmp.ne.s32.totalorder %s105, %s108
      %p117 = scmp.eq.s32.totalorder %s27, 1
      %p118 = por %p116, %p117
      %p119 = scmp.ne.s32.totalorder %s108, %s109
      %p120 = scmp.eq.s32.totalorder %s27, 0
      %p121 = por %p119, %p120
      %p122 = scmp.ne.s32.totalorder %s108, %s109
      %p123 = scmp.eq.s32.totalorder %s28, 1
      %p124 = por %p122, %p123
      %p126 = scmp.ne.s32.totalorder %s109, %s125
      %p127 = scmp.eq.s32.totalorder %s28, 0
      %p128 = por %p126, %p127
      %s129 = ssub.s32 %s22, %s29
      %p130 = scmp.eq.s32.totalorder %s129, 0
      %s132 = sadd.s32 %s131, 1
      %s133 = scalar_select %p130, %s131, %s132
      %p136 = pneg %p130
      %p137 = scmp.eq.s32.totalorder %s22, 1
      %p138 = por %p136, %p137
      %p139 = scmp.ne.s32.totalorder %s131, %s134
      %p140 = scmp.eq.s32.totalorder %s22, 0
      %p141 = por %p139, %p140
      %p142 = scmp.ne.s32.totalorder %s131, %s134
      %p143 = scmp.eq.s32.totalorder %s27, 1
      %p144 = por %p142, %p143
      %p145 = scmp.ne.s32.totalorder %s134, %s135
      %p146 = scmp.eq.s32.totalorder %s27, 0
      %p147 = por %p145, %p146
      %p148 = scmp.ne.s32.totalorder %s134, %s135
      %p149 = scmp.eq.s32.totalorder %s28, 1
      %p150 = por %p148, %p149
      %p152 = scmp.ne.s32.totalorder %s135, %s151
      %p153 = scmp.eq.s32.totalorder %s28, 0
      %p154 = por %p152, %p153
      %s155 = ssub.s32 %s22, %s29
      %p156 = scmp.eq.s32.totalorder %s155, 0
      %s158 = sadd.s32 %s157, 1
      %s159 = scalar_select %p156, %s157, %s158
      %p162 = pneg %p156
      %p163 = scmp.eq.s32.totalorder %s22, 1
      %p164 = por %p162, %p163
      %p165 = scmp.ne.s32.totalorder %s157, %s160
      %p166 = scmp.eq.s32.totalorder %s22, 0
      %p167 = por %p165, %p166
      %p168 = scmp.ne.s32.totalorder %s157, %s160
      %p169 = scmp.eq.s32.totalorder %s27, 1
      %p170 = por %p168, %p169
      %p171 = scmp.ne.s32.totalorder %s160, %s161
      %p172 = scmp.eq.s32.totalorder %s27, 0
      %p173 = por %p171, %p172
      %p174 = scmp.ne.s32.totalorder %s160, %s161
      %p175 = scmp.eq.s32.totalorder %s28, 1
      %p176 = por %p174, %p175
      %p178 = scmp.ne.s32.totalorder %s161, %s177
      %p179 = scmp.eq.s32.totalorder %s28, 0
      %p180 = por %p178, %p179
      %p181 = scmp.le.s32.totalorder 1, %s22
      %p182 = scmp.lt.s32.totalorder %s22, 3
      %p183 = pnand %p181, %p182
      %p184 = pneg %p183
      // Predicated region
      $region9: #{tpu_custom_call.1} parent=5 // pred_check
        _
      $region10: #{tpu_custom_call.1} parent=5 // pred_check_branch
        %186 = sbr.rel (%p183) target = $region12
      $region11: #{tpu_custom_call.1} parent=5 // pred_region
        %s187 = ssub.s32 %s22, 1
        // Predicated region
        $region13: #{tpu_custom_call.1} parent=11 // pred_check
          %p188 = pneg %p43
        $region14: #{tpu_custom_call.1} parent=11 // pred_check_branch
          %190 = sbr.rel (%p188) target = $region16
        $region15: #{tpu_custom_call.1} parent=11 // pred_region
          %s192 = ssub.s32 256, 256
          %193 = vsyncadd [#allocation3], %s192
          %s194 = sshll.u32 [#allocation2], 4
          %s195 = int_to_ptr.vmem [resolvable:$true] %s194
          %200 = dma.hbm_to_vmem [thread:$0]  %s0, 256, %s195, [#allocation3], 128, 128, 8
        $region16: #{tpu_custom_call.1} parent=11 // pred_fallthru
          _
      $region12: #{tpu_custom_call.1} parent=5 // pred_fallthru
        _
      %p201 = scmp.lt.s32.totalorder %s22, 2
      // Predicated region
      $region17: #{tpu_custom_call.1} parent=5 // pred_check
        %p202 = pneg %p201
      $region18: #{tpu_custom_call.1} parent=5 // pred_check_branch
        %204 = sbr.rel (%p202) target = $region20
      $region19: #{tpu_custom_call.1} parent=5 // pred_region
        // Predicated region
        $region21: #{tpu_custom_call.1} parent=19 // pred_check
          %p205 = pneg %p63
        $region22: #{tpu_custom_call.1} parent=19 // pred_check_branch
          %207 = sbr.rel (%p205) target = $region24
        $region23: #{tpu_custom_call.1} parent=19 // pred_region
          %s208 = sand.u32 %s22, 1
          %s209 = scalar_lea.sflag [#allocation6], %s208
          %s210 = sand.u32 %s53, 1
          %s211 = smul.addr %s210, 16
          %s212 = scalar_lea.vmem [#allocation5], %s211
          %s214 = ssub.s32 256, 256
          %215 = vsyncadd %s209, %s214
          %s216 = smul.addr %s22, 2
          %s217 = smul.addr %s216, 128
          %s218 = scalar_lea.hbm %s1, %s217
          %s219 = sshll.u32 %s212, 4
          %s220 = int_to_ptr.vmem [resolvable:$true] %s219
          %225 = dma.hbm_to_vmem [thread:$0]  %s218, 256, %s220, %s209, 128, 128, 8
        $region24: #{tpu_custom_call.1} parent=19 // pred_fallthru
          _
        // Predicated region
        $region25: #{tpu_custom_call.1} parent=19 // pred_check
          %p226 = pneg %p89
        $region26: #{tpu_custom_call.1} parent=19 // pred_check_branch
          %228 = sbr.rel (%p226) target = $region28
        $region27: #{tpu_custom_call.1} parent=19 // pred_region
          %s229 = sand.u32 %s22, 1
          %s230 = scalar_lea.sflag [#allocation6], %s229
          %s231 = sand.u32 %s79, 1
          %s232 = smul.addr %s231, 32
          %s233 = scalar_lea.vmem [#allocation7], %s232
          %s235 = ssub.s32 512, 512
          %236 = vsyncadd %s230, %s235
          %s237 = smul.addr %s22, 4
          %s238 = smul.addr %s237, 128
          %s239 = scalar_lea.hbm %s2, %s238
          %s240 = sshll.u32 %s233, 4
          %s241 = int_to_ptr.vmem [resolvable:$true] %s240
          %246 = dma.hbm_to_vmem [thread:$0]  %s239, 512, %s241, %s230, 128, 128, 8
        $region28: #{tpu_custom_call.1} parent=19 // pred_fallthru
          _
        // Predicated region
        $region29: #{tpu_custom_call.1} parent=19 // pred_check
          %p247 = pneg %p115
        $region30: #{tpu_custom_call.1} parent=19 // pred_check_branch
          %249 = sbr.rel (%p247) target = $region32
        $region31: #{tpu_custom_call.1} parent=19 // pred_region
          %s250 = sand.u32 %s105, 1
          %s251 = scalar_lea.sflag [#allocation9], %s250
          %s252 = sand.u32 %s105, 1
          %s253 = smul.addr %s252, 8
          %s254 = scalar_lea.vmem [#allocation8], %s253
          %s256 = ssub.s32 128, 128
          %257 = vsyncadd %s251, %s256
          %s258 = smul.addr %s22, 128
          %s259 = scalar_lea.hbm %s3, %s258
          %s261 = sshll.u32 %s254, 4
          %s262 = int_to_ptr.vmem [resolvable:$true] %s261
          %264 = dma.hbm_to_vmem [thread:$0]  %s259, 128, %s262, %s251
        $region32: #{tpu_custom_call.1} parent=19 // pred_fallthru
          _
      $region20: #{tpu_custom_call.1} parent=5 // pred_fallthru
        _
      %p265 = scmp.le.s32.totalorder 1, %s22
      %p266 = scmp.lt.s32.totalorder %s22, 3
      %p267 = pnand %p265, %p266
      %p268 = pneg %p267
      // Predicated region
      $region33: #{tpu_custom_call.1} parent=5 // pred_check
        _
      $region34: #{tpu_custom_call.1} parent=5 // pred_check_branch
        %270 = sbr.rel (%p267) target = $region36
      $region35: #{tpu_custom_call.1} parent=5 // pred_region
        %s271 = ssub.s32 %s22, 1
        // Predicated region
        $region37: #{tpu_custom_call.1} parent=35 // pred_check
          %p272 = pneg %p43
        $region38: #{tpu_custom_call.1} parent=35 // pred_check_branch
          %274 = sbr.rel (%p272) target = $region40
        $region39: #{tpu_custom_call.1} parent=35 // pred_region
          %275 = dma.done [#allocation3], 256
        $region40: #{tpu_custom_call.1} parent=35 // pred_fallthru
          _
        %s276 = sand.u32 %s27, 1
        %s277 = scalar_lea.sflag [#allocation6], %s276
        %s278 = sand.u32 %s56, 1
        %s279 = smul.addr %s278, 16
        %s280 = scalar_lea.vmem [#allocation5], %s279
        // Predicated region
        $region41: #{tpu_custom_call.1} parent=35 // pred_check
          %p281 = pneg %p69
        $region42: #{tpu_custom_call.1} parent=35 // pred_check_branch
          %283 = sbr.rel (%p281) target = $region44
        $region43: #{tpu_custom_call.1} parent=35 // pred_region
          %284 = dma.done %s277, 256
        $region44: #{tpu_custom_call.1} parent=35 // pred_fallthru
          _
        %s285 = sand.u32 %s27, 1
        %s286 = scalar_lea.sflag [#allocation6], %s285
        %s287 = sand.u32 %s82, 1
        %s288 = smul.addr %s287, 32
        %s289 = scalar_lea.vmem [#allocation7], %s288
        // Predicated region
        $region45: #{tpu_custom_call.1} parent=35 // pred_check
          %p290 = pneg %p95
        $region46: #{tpu_custom_call.1} parent=35 // pred_check_branch
          %292 = sbr.rel (%p290) target = $region48
        $region47: #{tpu_custom_call.1} parent=35 // pred_region
          %293 = dma.done %s286, 512
        $region48: #{tpu_custom_call.1} parent=35 // pred_fallthru
          _
        %s294 = sand.u32 %s108, 1
        %s295 = scalar_lea.sflag [#allocation9], %s294
        %s296 = sand.u32 %s108, 1
        %s297 = smul.addr %s296, 8
        %s298 = scalar_lea.vmem [#allocation8], %s297
        // Predicated region
        $region49: #{tpu_custom_call.1} parent=35 // pred_check
          %p299 = pneg %p121
        $region50: #{tpu_custom_call.1} parent=35 // pred_check_branch
          %301 = sbr.rel (%p299) target = $region52
        $region51: #{tpu_custom_call.1} parent=35 // pred_region
          %302 = dma.done %s295, 128
        $region52: #{tpu_custom_call.1} parent=35 // pred_fallthru
          _
        %p303 = pneg %p43
        %p304 = pneg %p40
        %s305 = sand.u32 %s27, 1
        %s306 = scalar_lea.sflag [#allocation6], %s305
        %s307 = sand.u32 %s56, 1
        %s308 = smul.addr %s307, 16
        %s309 = scalar_lea.vmem [#allocation5], %s308
        %p310 = pneg %p69
        %p311 = pneg %p66
        %s312 = sand.u32 %s27, 1
        %s313 = scalar_lea.sflag [#allocation6], %s312
        %s314 = sand.u32 %s82, 1
        %s315 = smul.addr %s314, 32
        %s316 = scalar_lea.vmem [#allocation7], %s315
        %p317 = pneg %p95
        %p318 = pneg %p92
        %s319 = sand.u32 %s108, 1
        %s320 = scalar_lea.sflag [#allocation9], %s319
        %s321 = sand.u32 %s108, 1
        %s322 = smul.addr %s321, 8
        %s323 = scalar_lea.vmem [#allocation8], %s322
        %p324 = pneg %p121
        %p325 = pneg %p118
        %p326 = pneg %p147
        %p327 = pneg %p144
        %p328 = scmp.lt.s32.totalorder %s27, 1
        %s329 = scalar_select %p328, %s27, 1
        %s330 = scalar_lea.vmem %s4, %s329
        %p331 = pneg %p173
        %p332 = pneg %p170
        %s333 = sand.u32 %s160, 1
        %s334 = scalar_lea.sflag [#allocation4], %s333
        %s335 = sand.u32 %s160, 1
        %s336 = scalar_lea.vmem [#allocation10], %s335
        %p337 = scmp.lt.s32.totalorder %s27, 1
        %s338 = scalar_select %p337, %s27, 1
        %s339 = scalar_lea.vmem %s4, %s338
        %v340 = vld [vmem:[#allocation2] sm:$0xff]
        %v341 = vld [vmem:[#allocation2 + $0x8] sm:$0xff]
        %v342 = vld [vmem:[%s280] sm:$0xff]
        %v343 = vld [vmem:[%s280 + $0x8] sm:$0xff]
        %v344 = vld [vmem:[%s289] sm:$0xff]
        %v345 = vld [vmem:[%s289 + $0x8] sm:$0xff]
        %v346 = vld [vmem:[%s289 + $0x10] sm:$0xff]
        %v347 = vld [vmem:[%s289 + $0x18] sm:$0xff]
        %v348 = vld [vmem:[%s298] sm:$0xff]
        %vm349 = vcmask 261120
        %v351 = vsel %vm349, %v340, 0
        %v354 = vsel %vm349, %v341, 0
        %356 = vmatprep.subr.mxu0 0.0
        %357 = vmatpush1.msra.mxu0 0.0
        %358 = vmatprep.subr.mxu0 0.0
        %359 = vmatpush1.msra.mxu0 0.0
        %360 = vmatprep.subr.mxu0 0.0
        %361 = vmatpush1.msra.mxu0 0.0
        %362 = vmatprep.subr.mxu0 0.0
        %363 = vmatpush1.msra.mxu0 0.0
        %364 = vmatprep.subr.mxu0 0.0
        %365 = vmatpush1.msra.mxu0 0.0
        %366 = vmatprep.subr.mxu0 0.0
        %367 = vmatpush1.msra.mxu0 0.0
        %368 = vmatprep.subr.mxu0 0.0
        %369 = vmatpush1.msra.mxu0 0.0
        %370 = vmatprep.subr.mxu0 0.0
        %371 = vmatpush1.msra.mxu0 0.0
        %372 = vmatprep.subr.mxu0 0.0
        %373 = vmatpush1.msra.mxu0 0.0
        %374 = vmatprep.subr.mxu0 0.0
        %375 = vmatpush1.msra.mxu0 0.0
        %376 = vmatprep.subr.mxu0 0.0
        %377 = vmatpush1.msra.mxu0 0.0
        %378 = vmatprep.subr.mxu0 0.0
        %379 = vmatpush1.msra.mxu0 0.0
        %380 = vmatprep.subr.mxu0 0.0
        %381 = vmatpush1.msra.mxu0 %v347
        %382 = vmatprep.subr.mxu0 0.0
        %383 = vmatpush1.msra.mxu0 %v346
        %384 = vmatprep.subr.mxu0 0.0
        %385 = vmatpush1.msra.mxu0 %v345
        %386 = vmatprep.subr.mxu0 0.0
        %387 = vmatpush1.msra.mxu0 %v344
        %388 = vmatprep.subr.mxu0 0.0
        %389 = vmatpush2.msra.mxu0 0.0
        %390 = vmatprep.subr.mxu0 0.0
        %391 = vmatpush2.msra.mxu0 0.0
        %392 = vmatprep.subr.mxu0 0.0
        %393 = vmatpush2.msra.mxu0 0.0
        %394 = vmatprep.subr.mxu0 0.0
        %395 = vmatpush2.msra.mxu0 0.0
        %396 = vmatprep.subr.mxu0 0.0
        %397 = vmatpush2.msra.mxu0 0.0
        %398 = vmatprep.subr.mxu0 0.0
        %399 = vmatpush2.msra.mxu0 0.0
        %400 = vmatprep.subr.mxu0 0.0
        %401 = vmatpush2.msra.mxu0 0.0
        %402 = vmatprep.subr.mxu0 0.0
        %403 = vmatpush2.msra.mxu0 0.0
        %404 = vmatprep.subr.mxu0 0.0
        %405 = vmatpush2.msra.mxu0 0.0
        %406 = vmatprep.subr.mxu0 0.0
        %407 = vmatpush2.msra.mxu0 0.0
        %408 = vmatprep.subr.mxu0 0.0
        %409 = vmatpush2.msra.mxu0 0.0
        %410 = vmatprep.subr.mxu0 0.0
        %411 = vmatpush2.msra.mxu0 0.0
        %412 = vmatprep.subr.mxu0 0.0
        %413 = vmatpush2.msra.mxu0 0.0
        %414 = vmatprep.subr.mxu0 0.0
        %415 = vmatpush2.msra.mxu0 0.0
        %416 = vmatprep.subr.mxu0 0.0
        %417 = vmatpush2.msra.mxu0 0.0
        %418 = vmatprep.subr.mxu0 0.0
        %419 = vmatpush2.msra.mxu0 0.0
        %420 = vmatprep.mubr.f32.mxu0 0.0
        %421 = vmatmul.mubr.f32.gmra.mxu0 %v351
        %v422 = vpop.f32.mrf.mxu0
        %v423 = vadd.f32 0.0, %v422
        %v424 = vpop.f32.mrf.mxu0
        %425 = vmatprep.mubr.f32.mxu0 0.0
        %426 = vmatmul.mubr.f32.gmra.mxu0 %v354
        %v427 = vpop.f32.mrf.mxu0
        %v428 = vadd.f32 0.0, %v427
        %v429 = vpop.f32.mrf.mxu0
        %430 = vdwg.mxu0
        %v431 = vlaneseq
        %v432 = vshrl.u32 %v431, 7
        %v433 = vsub.s32 0, %v432
        %v434 = vrot.slane %v348, %v433
        %v435 = vadd.f32 %v423, %v434
        %v436 = vadd.f32 %v428, %v434
        %v437 = vtanh.pop %v435
        %v438 = vtanh.pop %v436
        %v439 = vlaneseq
        %v440 = vshrl.u32 %v439, 7
        %v441 = vsub.s32 1, %v440
        %v442 = vrot.slane %v348, %v441
        %444 = vrot.lane.b32.xlu0 %v442, 32
        %v445 = vpop.permute.xlu0 %444
        %v447 = vadd.f32 %v423, %v445
        %v448 = vadd.f32 %v428, %v445
        %v449 = vmax.f32 %v447, 0.0
        %v450 = vmax.f32 %v448, 0.0
        %v451 = vlaneseq
        %v452 = vshrl.u32 %v451, 7
        %v453 = vsub.s32 2, %v452
        %v454 = vrot.slane %v348, %v453
        %459 = vrot.lane.b32.xlu0 %v344, 64
        %v460 = vpop.permute.xlu0 %459
        %461 = vrot.lane.b32.xlu0 %v345, 64
        %v462 = vpop.permute.xlu0 %461
        %463 = vrot.lane.b32.xlu0 %v346, 64
        %v464 = vpop.permute.xlu0 %463
        %465 = vrot.lane.b32.xlu0 %v347, 64
        %v466 = vpop.permute.xlu0 %465
        %v472 = vsel %vm349, %v342, 0
        %v475 = vsel %vm349, %v343, 0
        %477 = vmatprep.subr.mxu0 0.0
        %478 = vmatpush1.msra.mxu0 0.0
        %479 = vmatprep.subr.mxu0 0.0
        %480 = vmatpush1.msra.mxu0 0.0
        %481 = vmatprep.subr.mxu0 0.0
        %482 = vmatpush1.msra.mxu0 0.0
        %483 = vmatprep.subr.mxu0 0.0
        %484 = vmatpush1.msra.mxu0 0.0
        %485 = vmatprep.subr.mxu0 0.0
        %486 = vmatpush1.msra.mxu0 0.0
        %487 = vmatprep.subr.mxu0 0.0
        %488 = vmatpush1.msra.mxu0 0.0
        %489 = vmatprep.subr.mxu0 0.0
        %490 = vmatpush1.msra.mxu0 0.0
        %491 = vmatprep.subr.mxu0 0.0
        %492 = vmatpush1.msra.mxu0 0.0
        %493 = vmatprep.subr.mxu0 0.0
        %494 = vmatpush1.msra.mxu0 0.0
        %495 = vmatprep.subr.mxu0 0.0
        %496 = vmatpush1.msra.mxu0 0.0
        %497 = vmatprep.subr.mxu0 0.0
        %498 = vmatpush1.msra.mxu0 0.0
        %499 = vmatprep.subr.mxu0 0.0
        %500 = vmatpush1.msra.mxu0 0.0
        %501 = vmatprep.subr.mxu0 0.0
        %502 = vmatpush1.msra.mxu0 %v466
        %503 = vmatprep.subr.mxu0 0.0
        %504 = vmatpush1.msra.mxu0 %v464
        %505 = vmatprep.subr.mxu0 0.0
        %506 = vmatpush1.msra.mxu0 %v462
        %507 = vmatprep.subr.mxu0 0.0
        %508 = vmatpush1.msra.mxu0 %v460
        %509 = vmatprep.subr.mxu0 0.0
        %510 = vmatpush2.msra.mxu0 0.0
        %511 = vmatprep.subr.mxu0 0.0
        %512 = vmatpush2.msra.mxu0 0.0
        %513 = vmatprep.subr.mxu0 0.0
        %514 = vmatpush2.msra.mxu0 0.0
        %515 = vmatprep.subr.mxu0 0.0
        %516 = vmatpush2.msra.mxu0 0.0
        %517 = vmatprep.subr.mxu0 0.0
        %518 = vmatpush2.msra.mxu0 0.0
        %519 = vmatprep.subr.mxu0 0.0
        %520 = vmatpush2.msra.mxu0 0.0
        %521 = vmatprep.subr.mxu0 0.0
        %522 = vmatpush2.msra.mxu0 0.0
        %523 = vmatprep.subr.mxu0 0.0
        %524 = vmatpush2.msra.mxu0 0.0
        %525 = vmatprep.subr.mxu0 0.0
        %526 = vmatpush2.msra.mxu0 0.0
        %527 = vmatprep.subr.mxu0 0.0
        %528 = vmatpush2.msra.mxu0 0.0
        %529 = vmatprep.subr.mxu0 0.0
        %530 = vmatpush2.msra.mxu0 0.0
        %531 = vmatprep.subr.mxu0 0.0
        %532 = vmatpush2.msra.mxu0 0.0
        %533 = vmatprep.subr.mxu0 0.0
        %534 = vmatpush2.msra.mxu0 0.0
        %535 = vmatprep.subr.mxu0 0.0
        %536 = vmatpush2.msra.mxu0 0.0
        %537 = vmatprep.subr.mxu0 0.0
        %538 = vmatpush2.msra.mxu0 0.0
        %539 = vmatprep.subr.mxu0 0.0
        %540 = vmatpush2.msra.mxu0 0.0
        %541 = vmatprep.mubr.f32.mxu0 0.0
        %542 = vmatmul.mubr.f32.gmra.mxu0 %v472
        %v543 = vpop.f32.mrf.mxu0
        %v544 = vadd.f32 %v454, %v543
        %v545 = vpop.f32.mrf.mxu0
        %546 = vmatprep.mubr.f32.mxu0 0.0
        %547 = vmatmul.mubr.f32.gmra.mxu0 %v475
        %v548 = vpop.f32.mrf.mxu0
        %v549 = vadd.f32 %v454, %v548
        %v550 = vpop.f32.mrf.mxu0
        %551 = vdwg.mxu0
        %v552 = vtanh.pop %v544
        %v553 = vtanh.pop %v549
        %v554 = vmul.f32 %v437, %v437
        %v555 = vmul.f32 %v438, %v438
        %v556 = vsel %vm349, %v554, 0.0
        %557 = vadd.xlane.f32.xlu0 %v556
        %v558 = vpop.xlane.xlu0 %557
        %v559 = vsel %vm349, %v555, 0.0
        %560 = vadd.xlane.f32.xlu0 %v559
        %v561 = vpop.xlane.xlu0 %560
        %v562 = vmax.f32 %v558, 1e-24
        %v563 = vmax.f32 %v561, 1e-24
        %v564 = vrsqrt.pop %v562
        %v565 = vrsqrt.pop %v563
        %v566 = vmul.f32 %v437, %v564
        %v567 = vmul.f32 %v438, %v565
        %v568 = vmul.f32 %v552, %v552
        %v569 = vmul.f32 %v553, %v553
        %v570 = vsel %vm349, %v568, 0.0
        %571 = vadd.xlane.f32.xlu0 %v570
        %v572 = vpop.xlane.xlu0 %571
        %v573 = vsel %vm349, %v569, 0.0
        %574 = vadd.xlane.f32.xlu0 %v573
        %v575 = vpop.xlane.xlu0 %574
        %v576 = vmax.f32 %v572, 1e-24
        %v577 = vmax.f32 %v575, 1e-24
        %v578 = vrsqrt.pop %v576
        %v579 = vrsqrt.pop %v577
        %v580 = vmul.f32 %v552, %v578
        %v581 = vmul.f32 %v553, %v579
        %v583 = vsel %vm349, %v566, 0
        %v586 = vsel %vm349, %v567, 0
        %v589 = vsel %vm349, %v580, 0
        %v592 = vsel %vm349, %v581, 0
        %594 = vmatprep.subr.mxu0 0.0
        %595 = vmatpush1.xpose.msra.mxu0 0.0
        %596 = vmatprep.subr.mxu0 0.0
        %597 = vmatpush1.xpose.msra.mxu0 0.0
        %598 = vmatprep.subr.mxu0 0.0
        %599 = vmatpush1.xpose.msra.mxu0 0.0
        %600 = vmatprep.subr.mxu0 0.0
        %601 = vmatpush1.xpose.msra.mxu0 0.0
        %602 = vmatprep.subr.mxu0 0.0
        %603 = vmatpush1.xpose.msra.mxu0 0.0
        %604 = vmatprep.subr.mxu0 0.0
        %605 = vmatpush1.xpose.msra.mxu0 0.0
        %606 = vmatprep.subr.mxu0 0.0
        %607 = vmatpush1.xpose.msra.mxu0 0.0
        %608 = vmatprep.subr.mxu0 0.0
        %609 = vmatpush1.xpose.msra.mxu0 0.0
        %610 = vmatprep.subr.mxu0 0.0
        %611 = vmatpush1.xpose.msra.mxu0 0.0
        %612 = vmatprep.subr.mxu0 0.0
        %613 = vmatpush1.xpose.msra.mxu0 0.0
        %614 = vmatprep.subr.mxu0 0.0
        %615 = vmatpush1.xpose.msra.mxu0 0.0
        %616 = vmatprep.subr.mxu0 0.0
        %617 = vmatpush1.xpose.msra.mxu0 0.0
        %618 = vmatprep.subr.mxu0 0.0
        %619 = vmatpush1.xpose.msra.mxu0 0.0
        %620 = vmatprep.subr.mxu0 0.0
        %621 = vmatpush1.xpose.msra.mxu0 0.0
        %622 = vmatprep.subr.mxu0 0.0
        %623 = vmatpush1.xpose.msra.mxu0 %v592
        %624 = vmatprep.subr.mxu0 0.0
        %625 = vmatpush1.xpose.msra.mxu0 %v589
        %626 = vmatprep.subr.mxu0 0.0
        %627 = vmatpush2.xpose.msra.mxu0 0.0
        %628 = vmatprep.subr.mxu0 0.0
        %629 = vmatpush2.xpose.msra.mxu0 0.0
        %630 = vmatprep.subr.mxu0 0.0
        %631 = vmatpush2.xpose.msra.mxu0 0.0
        %632 = vmatprep.subr.mxu0 0.0
        %633 = vmatpush2.xpose.msra.mxu0 0.0
        %634 = vmatprep.subr.mxu0 0.0
        %635 = vmatpush2.xpose.msra.mxu0 0.0
        %636 = vmatprep.subr.mxu0 0.0
        %637 = vmatpush2.xpose.msra.mxu0 0.0
        %638 = vmatprep.subr.mxu0 0.0
        %639 = vmatpush2.xpose.msra.mxu0 0.0
        %640 = vmatprep.subr.mxu0 0.0
        %641 = vmatpush2.xpose.msra.mxu0 0.0
        %642 = vmatprep.subr.mxu0 0.0
        %643 = vmatpush2.xpose.msra.mxu0 0.0
        %644 = vmatprep.subr.mxu0 0.0
        %645 = vmatpush2.xpose.msra.mxu0 0.0
        %646 = vmatprep.subr.mxu0 0.0
        %647 = vmatpush2.xpose.msra.mxu0 0.0
        %648 = vmatprep.subr.mxu0 0.0
        %649 = vmatpush2.xpose.msra.mxu0 0.0
        %650 = vmatprep.subr.mxu0 0.0
        %651 = vmatpush2.xpose.msra.mxu0 0.0
        %652 = vmatprep.subr.mxu0 0.0
        %653 = vmatpush2.xpose.msra.mxu0 0.0
        %654 = vmatprep.subr.mxu0 0.0
        %655 = vmatpush2.xpose.msra.mxu0 0.0
        %656 = vmatprep.subr.mxu0 0.0
        %657 = vmatpush2.xpose.msra.mxu0 0.0
        %658 = vmatprep.mubr.f32.mxu0 0.0
        %659 = vmatmul.mubr.f32.gmra.mxu0 %v583
        %v660 = vpop.f32.mrf.mxu0
        %v661 = vadd.f32 0.0, %v660
        %v662 = vpop.f32.mrf.mxu0
        %663 = vmatprep.mubr.f32.mxu0 0.0
        %664 = vmatmul.mubr.f32.gmra.mxu0 %v586
        %v665 = vpop.f32.mrf.mxu0
        %v666 = vadd.f32 0.0, %v665
        %v667 = vpop.f32.mrf.mxu0
        %668 = vdwg.mxu0
        %670 = vset.pattern.permute.xlu0 0
        %671 = vperm.xlu0 %670, %v348
        %v672 = vpop.permute.xlu0 %671
        %v673 = vrot.slane %v348, 3
        %v674 = vrot.slane %v672, 5
        %vm676 = vcmask 130048
        %v677 = vsel %vm676, %v673, 0
        %v680 = vsel %vm676, %v661, 0
        %v683 = vsel %vm676, %v666, 0
        %685 = vmatprep.subr.mxu0 0.0
        %686 = vmatpush1.xpose.msra.mxu0 0.0
        %687 = vmatprep.subr.mxu0 0.0
        %688 = vmatpush1.xpose.msra.mxu0 0.0
        %689 = vmatprep.subr.mxu0 0.0
        %690 = vmatpush1.xpose.msra.mxu0 0.0
        %691 = vmatprep.subr.mxu0 0.0
        %692 = vmatpush1.xpose.msra.mxu0 0.0
        %693 = vmatprep.subr.mxu0 0.0
        %694 = vmatpush1.xpose.msra.mxu0 0.0
        %695 = vmatprep.subr.mxu0 0.0
        %696 = vmatpush1.xpose.msra.mxu0 0.0
        %697 = vmatprep.subr.mxu0 0.0
        %698 = vmatpush1.xpose.msra.mxu0 0.0
        %699 = vmatprep.subr.mxu0 0.0
        %700 = vmatpush1.xpose.msra.mxu0 0.0
        %701 = vmatprep.subr.mxu0 0.0
        %702 = vmatpush1.xpose.msra.mxu0 0.0
        %703 = vmatprep.subr.mxu0 0.0
        %704 = vmatpush1.xpose.msra.mxu0 0.0
        %705 = vmatprep.subr.mxu0 0.0
        %706 = vmatpush1.xpose.msra.mxu0 0.0
        %707 = vmatprep.subr.mxu0 0.0
        %708 = vmatpush1.xpose.msra.mxu0 0.0
        %709 = vmatprep.subr.mxu0 0.0
        %710 = vmatpush1.xpose.msra.mxu0 0.0
        %711 = vmatprep.subr.mxu0 0.0
        %712 = vmatpush1.xpose.msra.mxu0 0.0
        %713 = vmatprep.subr.mxu0 0.0
        %714 = vmatpush1.xpose.msra.mxu0 %v683
        %715 = vmatprep.subr.mxu0 0.0
        %716 = vmatpush1.xpose.msra.mxu0 %v680
        %717 = vmatprep.subr.mxu0 0.0
        %718 = vmatpush2.xpose.msra.mxu0 0.0
        %719 = vmatprep.subr.mxu0 0.0
        %720 = vmatpush2.xpose.msra.mxu0 0.0
        %721 = vmatprep.subr.mxu0 0.0
        %722 = vmatpush2.xpose.msra.mxu0 0.0
        %723 = vmatprep.subr.mxu0 0.0
        %724 = vmatpush2.xpose.msra.mxu0 0.0
        %725 = vmatprep.subr.mxu0 0.0
        %726 = vmatpush2.xpose.msra.mxu0 0.0
        %727 = vmatprep.subr.mxu0 0.0
        %728 = vmatpush2.xpose.msra.mxu0 0.0
        %729 = vmatprep.subr.mxu0 0.0
        %730 = vmatpush2.xpose.msra.mxu0 0.0
        %731 = vmatprep.subr.mxu0 0.0
        %732 = vmatpush2.xpose.msra.mxu0 0.0
        %733 = vmatprep.subr.mxu0 0.0
        %734 = vmatpush2.xpose.msra.mxu0 0.0
        %735 = vmatprep.subr.mxu0 0.0
        %736 = vmatpush2.xpose.msra.mxu0 0.0
        %737 = vmatprep.subr.mxu0 0.0
        %738 = vmatpush2.xpose.msra.mxu0 0.0
        %739 = vmatprep.subr.mxu0 0.0
        %740 = vmatpush2.xpose.msra.mxu0 0.0
        %741 = vmatprep.subr.mxu0 0.0
        %742 = vmatpush2.xpose.msra.mxu0 0.0
        %743 = vmatprep.subr.mxu0 0.0
        %744 = vmatpush2.xpose.msra.mxu0 0.0
        %745 = vmatprep.subr.mxu0 0.0
        %746 = vmatpush2.xpose.msra.mxu0 0.0
        %747 = vmatprep.subr.mxu0 0.0
        %748 = vmatpush2.xpose.msra.mxu0 0.0
        %749 = vmatprep.mubr.f32.mxu0 0.0
        %750 = vmatmul.mubr.f32.gmra.mxu0 %v677
        %v751 = vpop.f32.mrf.mxu0
        %v752 = vadd.f32 %v674, %v751
        %v753 = vpop.f32.mrf.mxu0
        %754 = vdwg.mxu0
        %755 = vset.pattern.permute.xlu0 2
        %756 = vperm.xlu0 %755, %v348
        %v757 = vpop.permute.xlu0 %756
        %v758 = vrot.slane %v757, 5
        %v760 = vmul.f32 %v752, %v758
        %vm761 = vcmask 122880
        %v762 = vsel %vm761, %v760, -inf
        %763 = vmax.xlane.f32.xlu0 %v762
        %v764 = vpop.xlane.xlu0 %763
        %v765 = vsub.f32 %v760, %v764
        %v766 = vmul.f32 %v765, 1.442695
        %v767 = vpow.pop %v766
        %v768 = vsel %vm761, %v767, 0.0
        %769 = vadd.xlane.f32.xlu0 %v768
        %v770 = vpop.xlane.xlu0 %769
        %v771 = vrcp.pop %v770
        %v772 = vmul.f32 %v767, %v771
        %775 = vrot.lane.b32.xlu0 %v449, 96
        %v776 = vpop.permute.xlu0 %775
        %777 = vrot.lane.b32.xlu0 %v450, 96
        %v778 = vpop.permute.xlu0 %777
        %v782 = vsel %vm676, %v772, 0
        %784 = vmatprep.subr.mxu0 0.0
        %785 = vmatpush1.msra.mxu0 0.0
        %786 = vmatprep.subr.mxu0 0.0
        %787 = vmatpush1.msra.mxu0 0.0
        %788 = vmatprep.subr.mxu0 0.0
        %789 = vmatpush1.msra.mxu0 0.0
        %790 = vmatprep.subr.mxu0 0.0
        %791 = vmatpush1.msra.mxu0 0.0
        %792 = vmatprep.subr.mxu0 0.0
        %793 = vmatpush1.msra.mxu0 0.0
        %794 = vmatprep.subr.mxu0 0.0
        %795 = vmatpush1.msra.mxu0 0.0
        %796 = vmatprep.subr.mxu0 0.0
        %797 = vmatpush1.msra.mxu0 0.0
        %798 = vmatprep.subr.mxu0 0.0
        %799 = vmatpush1.msra.mxu0 0.0
        %800 = vmatprep.subr.mxu0 0.0
        %801 = vmatpush1.msra.mxu0 0.0
        %802 = vmatprep.subr.mxu0 0.0
        %803 = vmatpush1.msra.mxu0 0.0
        %804 = vmatprep.subr.mxu0 0.0
        %805 = vmatpush1.msra.mxu0 0.0
        %806 = vmatprep.subr.mxu0 0.0
        %807 = vmatpush1.msra.mxu0 0.0
        %808 = vmatprep.subr.mxu0 0.0
        %809 = vmatpush1.msra.mxu0 0.0
        %810 = vmatprep.subr.mxu0 0.0
        %811 = vmatpush1.msra.mxu0 0.0
        %812 = vmatprep.subr.mxu0 0.0
        %813 = vmatpush1.msra.mxu0 %v778
        %814 = vmatprep.subr.mxu0 0.0
        %815 = vmatpush1.msra.mxu0 %v776
        %816 = vmatprep.subr.mxu0 0.0
        %817 = vmatpush2.msra.mxu0 0.0
        %818 = vmatprep.subr.mxu0 0.0
        %819 = vmatpush2.msra.mxu0 0.0
        %820 = vmatprep.subr.mxu0 0.0
        %821 = vmatpush2.msra.mxu0 0.0
        %822 = vmatprep.subr.mxu0 0.0
        %823 = vmatpush2.msra.mxu0 0.0
        %824 = vmatprep.subr.mxu0 0.0
        %825 = vmatpush2.msra.mxu0 0.0
        %826 = vmatprep.subr.mxu0 0.0
        %827 = vmatpush2.msra.mxu0 0.0
        %828 = vmatprep.subr.mxu0 0.0
        %829 = vmatpush2.msra.mxu0 0.0
        %830 = vmatprep.subr.mxu0 0.0
        %831 = vmatpush2.msra.mxu0 0.0
        %832 = vmatprep.subr.mxu0 0.0
        %833 = vmatpush2.msra.mxu0 0.0
        %834 = vmatprep.subr.mxu0 0.0
        %835 = vmatpush2.msra.mxu0 0.0
        %836 = vmatprep.subr.mxu0 0.0
        %837 = vmatpush2.msra.mxu0 0.0
        %838 = vmatprep.subr.mxu0 0.0
        %839 = vmatpush2.msra.mxu0 0.0
        %840 = vmatprep.subr.mxu0 0.0
        %841 = vmatpush2.msra.mxu0 0.0
        %842 = vmatprep.subr.mxu0 0.0
        %843 = vmatpush2.msra.mxu0 0.0
        %844 = vmatprep.subr.mxu0 0.0
        %845 = vmatpush2.msra.mxu0 0.0
        %846 = vmatprep.subr.mxu0 0.0
        %847 = vmatpush2.msra.mxu0 0.0
        %848 = vmatprep.mubr.f32.mxu0 0.0
        %849 = vmatmul.mubr.f32.gmra.mxu0 %v782
        %v850 = vpop.f32.mrf.mxu0
        %v851 = vadd.f32 0.0, %v850
        %v852 = vpop.f32.mrf.mxu0
        %853 = vdwg.mxu0
        %v854 = vrot.slane %v348, 4
        %v856 = vmul.f32 %v851, %v854
        %vm857 = vcmask 253952
        %v858 = vsel %vm857, %v856, 0.0
        %859 = vadd.xlane.f32.xlu0 %v858
        %v860 = vpop.xlane.xlu0 %859
        %v861 = vrot.slane %v348, 5
        %862 = vrot.lane.b32.xlu0 %v861, 127
        %v863 = vpop.permute.xlu0 %862
        %v865 = vadd.f32 %v860, %v863
        %vm866 = vcmask 0
        %867 = vst.msk [vmem:[%s339] sm:$0x1] %vm866, %v865
        %868 = vst.msk [vmem:[%s336] sm:$0x1] %vm761, %v772
        %p869 = scmp.lt.s32.totalorder %s27, 1
        %s870 = scalar_select %p869, %s27, 1
        %s871 = scalar_lea.vmem %s4, %s870
        %s872 = sand.u32 %s160, 1
        %s873 = scalar_lea.sflag [#allocation4], %s872
        %s874 = sand.u32 %s160, 1
        %s875 = scalar_lea.vmem [#allocation10], %s874
        // Predicated region
        $region53: #{tpu_custom_call.1} parent=35 // pred_check
          %p876 = pneg %p144
        $region54: #{tpu_custom_call.1} parent=35 // pred_check_branch
          %878 = sbr.rel (%p876) target = $region56
        $region55: #{tpu_custom_call.1} parent=35 // pred_region
          _
        $region56: #{tpu_custom_call.1} parent=35 // pred_fallthru
          _
        // Predicated region
        $region57: #{tpu_custom_call.1} parent=35 // pred_check
          %p879 = pneg %p170
        $region58: #{tpu_custom_call.1} parent=35 // pred_check_branch
          %881 = sbr.rel (%p879) target = $region60
        $region59: #{tpu_custom_call.1} parent=35 // pred_region
          %s883 = ssub.s32 16, 16
          %884 = vsyncadd %s873, %s883
          %s885 = smul.addr %s27, 16
          %s886 = scalar_lea.hbm %s5, %s885
          %s888 = sshll.u32 %s875, 4
          %s889 = int_to_ptr.vmem [resolvable:$true] %s888
          %891 = dma.vmem_to_hbm [thread:$0]  %s889, 16, %s886, %s873
        $region60: #{tpu_custom_call.1} parent=35 // pred_fallthru
          _
      $region36: #{tpu_custom_call.1} parent=5 // pred_fallthru
        _
      %p892 = scmp.le.s32.totalorder 2, %s22
      // Predicated region
      $region61: #{tpu_custom_call.1} parent=5 // pred_check
        %p893 = pneg %p892
      $region62: #{tpu_custom_call.1} parent=5 // pred_check_branch
        %895 = sbr.rel (%p893) target = $region64
      $region63: #{tpu_custom_call.1} parent=5 // pred_region
        %s896 = ssub.s32 %s22, 2
        // Predicated region
        $region65: #{tpu_custom_call.1} parent=63 // pred_check
          %p897 = pneg %p150
        $region66: #{tpu_custom_call.1} parent=63 // pred_check_branch
          %899 = sbr.rel (%p897) target = $region68
        $region67: #{tpu_custom_call.1} parent=63 // pred_region
          %p900 = scmp.lt.s32.totalorder %s28, 1
          %s901 = scalar_select %p900, %s28, 1
          %s902 = scalar_lea.vmem %s4, %s901
        $region68: #{tpu_custom_call.1} parent=63 // pred_fallthru
          _
        // Predicated region
        $region69: #{tpu_custom_call.1} parent=63 // pred_check
          %p903 = pneg %p176
        $region70: #{tpu_custom_call.1} parent=63 // pred_check_branch
          %905 = sbr.rel (%p903) target = $region72
        $region71: #{tpu_custom_call.1} parent=63 // pred_region
          %s906 = sand.u32 %s161, 1
          %s907 = scalar_lea.sflag [#allocation4], %s906
          %s908 = sand.u32 %s161, 1
          %s909 = scalar_lea.vmem [#allocation10], %s908
          %910 = dma.done %s907, 16
        $region72: #{tpu_custom_call.1} parent=63 // pred_fallthru
          _
      $region64: #{tpu_custom_call.1} parent=5 // pred_fallthru
        _
    $region6: #{tpu_custom_call.1} parent=1 // loop_footer
      %s26 = sadd.s32 1, %s22
    $region7: #{tpu_custom_call.1} parent=1 // loop_footer_branch
      %21 = sbr.rel target = $region3
    $region8: #{tpu_custom_call.1} parent=1 // loop_exit
      _
    %911 = vsyncpa [#allocation3], 1
    %s912 = scalar_lea.sflag [#allocation3], 1
    %913 = vsyncpa %s912, 1
    %914 = vsyncpa [#allocation6], 1
    %s915 = scalar_lea.sflag [#allocation6], 1
    %916 = vsyncpa %s915, 1
    %917 = vsyncpa [#allocation9], 1
    %s918 = scalar_lea.sflag [#allocation9], 1
    %919 = vsyncpa %s918, 1
    %920 = vsyncpa [#allocation4], 1
    %s921 = scalar_lea.sflag [#allocation4], 1
    %922 = vsyncpa %s921, 1

</llo_original>
